<compile_context>
chip_gen: v5e
topology: v5e:2x2
jax: 0.10.0
libtpu: 0.0.40
codegen_flags: <defaults>
</compile_context>

<pallas_src>
import functools
import math

import numpy as np
import jax
import jax.numpy as jnp
from jax import lax
from jax.experimental import pallas as pl
from jax.experimental.pallas import tpu as pltpu


def _shift_lanes(x, d, size):
    """y[..., i] = x[..., (i + d) % size] for a static shift d.

    Written as two lane slices + one lane concat (exactly what jnp.roll lowers to) so the
    shift direction is unambiguous; wrapped lanes are zeroed by the validity mask later.
    """
    dd = d % size
    if dd == 0:
        return x
    return jnp.concatenate([x[..., dd:], x[..., :dd]], axis=-1)


def _group_conv_kernel(x_ref, w_ref, p_ref, m_ref, o_ref, *,
                       H, W, kH, kW, pad, n_blk, act_norm, eps, neg_slope,
                       matmul_dtype):
    cin_g = x_ref.shape[2]
    cout_g = w_ref.shape[1]
    S = H * W

    w = w_ref[0]                                        # (cout_g, KK) — resident per group
    if matmul_dtype is not None:
        w = w.astype(matmul_dtype)

    # ---- lane-dense im2col with fused zero padding ------------------------------------
    per_sample = []
    for n in range(n_blk):
        xn = x_ref[n, 0]                                # (cin_g, S): spatial already flat
        taps = []
        for kh in range(kH):
            for kw in range(kW):
                d = (kh - pad) * W + (kw - pad)         # flattened-spatial offset of tap
                t = _shift_lanes(xn, d, S)              # circular lane shift
                t = t * m_ref[kh * kW + kw]             # zero halo / wrapped positions
                taps.append(t)
        # (kH*kW*cin_g, S); K ordered (kh, kw, cin) to match the weight layout.
        per_sample.append(jnp.concatenate(taps, axis=0))
    # Fold the sample block into the lane (N) dim of the matmul: (KK, n_blk*S),
    # concatenated at 128-aligned lane boundaries (S is a multiple of 128).
    patches = per_sample[0] if n_blk == 1 else jnp.concatenate(per_sample, axis=-1)
    if matmul_dtype is not None:
        patches = patches.astype(matmul_dtype)

    # ---- one MXU contraction for the whole (group, sample-block) -----------------------
    acc = jnp.dot(w, patches, preferred_element_type=jnp.float32)   # (cout_g, n_blk*S)

    pv = p_ref[0].astype(jnp.float32)                   # (cout_g, 3) = [bias|gamma|beta]
    acc = acc + pv[:, 0:1]                              # conv bias

    # ---- per-sample GroupNorm (two-pass, f32) + LeakyReLU epilogue ----------------------
    for n in range(n_blk):
        a_n = acc[:, n * S:(n + 1) * S]                 # 128-aligned lane slice (cout_g, S)
        if act_norm:
            cnt = float(cout_g * S)
            mean = jnp.sum(a_n) / cnt
            cen = a_n - mean
            var = jnp.sum(cen * cen) / cnt              # two-pass (mean-shifted) variance
            inv = lax.rsqrt(var + eps)
            scale = pv[:, 1:2] * inv                    # gamma * inv           (cout_g, 1)
            shift = pv[:, 2:3] - mean * scale           # beta  - mean * scale  (cout_g, 1)
            y = a_n * scale + shift
            y = jnp.maximum(y, neg_slope * y)           # LeakyReLU(0.2)
        else:
            y = a_n
        o_ref[n, 0] = y.astype(o_ref.dtype)             # lane-dense (cout_g, S) store


def group_conv2d(x_nchw, weight, bias, gamma, beta, *, kernel_size=3, stride=1,
                 padding=0, groups=1, act_norm=False, n_block=None,
                 use_bf16_matmul=False):
    """GroupConv2d forward: (N, Cin, H, W) -> (N, Cout, H, W)  (stride=1, 'same' padding)."""
    N, Cin, H, W = x_nchw.shape
    Cout = weight.shape[0]
    if Cin % groups != 0:                  # mirrors the PyTorch module's fallback
        groups = 1
    G = groups
    assert Cout % G == 0, "out_channels must be divisible by groups"
    cin_g, cout_g = Cin // G, Cout // G
    kH = kW = kernel_size
    if stride != 1 or kernel_size % 2 == 0 or padding != (kernel_size - 1) // 2:
        raise NotImplementedError(
            "fast path supports odd kernel, stride=1, 'same' padding (MetaBlock usage)")
    S = H * W
    KK = kH * kW * cin_g

    # Sample-block size: amortize per-step cost and fill the MXU lanes; keep >=2 grid
    # steps on a parallel axis when G==1 so both v7x TensorCores stay busy.
    if n_block is None:
        n_block = min(8, N)
        if G == 1 and N >= 2:
            n_block = min(n_block, max(1, N // 2))
    n_block = max(1, min(n_block, N))
    while N % n_block:
        n_block -= 1
    NB = N // n_block

    matmul_dtype = jnp.bfloat16 if (use_bf16_matmul and x_nchw.dtype == jnp.float32) else None

    # --- glue: only free reshapes (no transposes of the activation tensor, no jnp.pad) ---
    x_blk = x_nchw.reshape(N, G, cin_g, S)
    # (Cout, cin_g, kH, kW) -> (G, cout_g, kH*kW*cin_g); K ordered (kh, kw, cin). Tiny, once.
    w_blk = weight.reshape(G, cout_g, cin_g, kH, kW) \
                  .transpose(0, 1, 3, 4, 2).reshape(G, cout_g, KK)
    # Packed per-channel params: (G, cout_g, 3) = [bias | gamma | beta]
    p_blk = jnp.stack([bias.reshape(G, cout_g),
                       gamma.reshape(G, cout_g),
                       beta.reshape(G, cout_g)], axis=-1)
    # Per-tap validity masks over the flattened output positions (fused padding).
    ho = np.arange(H).reshape(H, 1)
    wo = np.arange(W).reshape(1, W)
    m_np = np.zeros((kH * kW, 1, S), np.float32)
    for kh in range(kH):
        for kw in range(kW):
            valid = ((ho + kh - padding >= 0) & (ho + kh - padding < H) &
                     (wo + kw - padding >= 0) & (wo + kw - padding < W))
            m_np[kh * kW + kw, 0] = valid.reshape(-1).astype(np.float32)
    mask_arr = jnp.asarray(m_np).astype(x_nchw.dtype)

    kernel = functools.partial(
        _group_conv_kernel, H=H, W=W, kH=kH, kW=kW, pad=padding, n_blk=n_block,
        act_norm=act_norm, eps=1e-5, neg_slope=0.2, matmul_dtype=matmul_dtype)

    # VMEM budget: double-buffered in/out blocks + resident weights/params/masks +
    # patch operand + f32 accumulator (sized explicitly so v7x's 64 MiB is respected).
    isz = x_nchw.dtype.itemsize
    est = (2 * n_block * cin_g * S * isz + 2 * n_block * cout_g * S * isz
           + 2 * cout_g * KK * isz + 2 * cout_g * 3 * 4 + kH * kW * S * isz
           + 2 * KK * n_block * S * 4 + cout_g * n_block * S * 4)
    vmem_limit = int(min(100 * 1024 * 1024, max(32 * 1024 * 1024, 8 * est)))

    cost = pl.CostEstimate(
        flops=2 * N * Cout * S * cin_g * kH * kW,
        transcendentals=(N * G if act_norm else 0),
        bytes_accessed=int((x_blk.size + w_blk.size + mask_arr.size) * isz
                           + p_blk.size * 4 + N * Cout * S * isz))

    out = pl.pallas_call(
        kernel,
        out_shape=jax.ShapeDtypeStruct((N, G, cout_g, S), x_nchw.dtype),
        grid_spec=pltpu.PrefetchScalarGridSpec(
            num_scalar_prefetch=0,
            # g OUTER / sample-block INNER: weight/param/mask blocks (indexed by g only)
            # stay VMEM-resident across all inner steps.
            grid=(G, NB),
            in_specs=[
                pl.BlockSpec((n_block, 1, cin_g, S), lambda g, nb: (nb, g, 0, 0)),
                pl.BlockSpec((1, cout_g, KK), lambda g, nb: (g, 0, 0)),
                pl.BlockSpec((1, cout_g, 3), lambda g, nb: (g, 0, 0)),
                pl.BlockSpec((kH * kW, 1, S), lambda g, nb: (0, 0, 0)),
            ],
            out_specs=pl.BlockSpec((n_block, 1, cout_g, S), lambda g, nb: (nb, g, 0, 0)),
        ),
        compiler_params=pltpu.CompilerParams(
            dimension_semantics=("parallel", "parallel"),
            vmem_limit_bytes=vmem_limit),
        cost_estimate=cost,
    )(x_blk, w_blk, p_blk, mask_arr)

    # (N, G, cout_g, H*W) -> NCHW is a free reshape (group-major channel order matches
    # the grouped-conv output channel order).
    return out.reshape(N, Cout, H, W)


def _reference(x, weight, bias, gamma, beta, *, stride, padding, groups, act_norm):
    y = lax.conv_general_dilated(
        x, weight, (stride, stride), [(padding, padding), (padding, padding)],
        dimension_numbers=("NCHW", "OIHW", "NCHW"), feature_group_count=groups)
    y = y + bias[None, :, None, None]
    if act_norm:
        N, C, H, W = y.shape
        yg = y.reshape(N, groups, (C // groups) * H * W)
        mean = yg.mean(-1, keepdims=True)
        var = ((yg - mean) ** 2).mean(-1, keepdims=True)
        yn = ((yg - mean) / jnp.sqrt(var + 1e-5)).reshape(N, C, H, W)
        yn = yn * gamma[None, :, None, None] + beta[None, :, None, None]
        y = jnp.where(yn >= 0, yn, 0.2 * yn)
    return y


if __name__ == "__main__":
    # Small shapes consistent with the module: NCHW input, grouped 3x3 'same' conv,
    # GroupNorm(groups) + LeakyReLU(0.2).
    N, Cin, H, W = 2, 8, 16, 16
    Cout, ksize, stride, padding, groups = 16, 3, 1, 1, 2
    act_norm = True
    cin_g = Cin // groups

    key = jax.random.PRNGKey(0)
    kx, kw_, kb, kg, kbe = jax.random.split(key, 5)

    # Deterministic, PyTorch-Conv2d-style uniform init (kaiming-uniform bound).
    fan_in = cin_g * ksize * ksize
    bound = 1.0 / math.sqrt(fan_in)
    weight = jax.random.uniform(kw_, (Cout, cin_g, ksize, ksize),
                                jnp.float32, -bound, bound)
    bias = jax.random.uniform(kb, (Cout,), jnp.float32, -bound, bound)
    # Perturbed affine params so the packed gamma/beta path is actually exercised.
    gamma = 1.0 + 0.1 * jax.random.normal(kg, (Cout,), jnp.float32)
    beta = 0.1 * jax.random.normal(kbe, (Cout,), jnp.float32)

    x = jax.random.normal(kx, (N, Cin, H, W), jnp.float32)

    y = group_conv2d(x, weight, bias, gamma, beta,
                     kernel_size=ksize, stride=stride, padding=padding,
                     groups=groups, act_norm=act_norm)
    y = jax.block_until_ready(y)

    y_ref = _reference(x, weight, bias, gamma, beta,
                       stride=stride, padding=padding,
                       groups=groups, act_norm=act_norm)
    y_ref = jax.block_until_ready(y_ref)

    assert y.shape == y_ref.shape, (y.shape, y_ref.shape)
    err = float(jnp.max(jnp.abs(y - y_ref)))
    assert err < 2e-2, f"max abs error too large: {err}"

    print("KERNEL_OK")
</pallas_src>

<mosaic_0001>
module attributes {stable_mosaic.version = 11 : i64} {
  func.func @_group_conv_kernel(%arg0: i32, %arg1: i32, %arg2: memref<2x1x4x256xf32, #tpu.memory_space<vmem>>, %arg3: memref<1x8x36xf32, #tpu.memory_space<vmem>>, %arg4: memref<1x8x3xf32, #tpu.memory_space<vmem>>, %arg5: memref<9x1x256xf32, #tpu.memory_space<vmem>>, %arg6: memref<2x1x8x256xf32, #tpu.memory_space<vmem>>) attributes {dimension_semantics = [#tpu.dimension_semantics<parallel>, #tpu.dimension_semantics<parallel>], iteration_bounds = array<i64: 2, 1>, scalar_prefetch = 0 : i64, scratch_operands = 0 : i64, tpu.core_type = #tpu.core_type<tc>, window_params = [{transform_indices = @transform_0, window_bounds = array<i64: 2, 1, 4, 256>}, {transform_indices = @transform_1, window_bounds = array<i64: 1, 8, 36>}, {transform_indices = @transform_2, window_bounds = array<i64: 1, 8, 3>}, {pipeline_mode = #tpu.pipeline_mode<synchronous>, transform_indices = @transform_3, window_bounds = array<i64: 9, 1, 256>}, {transform_indices = @transform_4, window_bounds = array<i64: 2, 1, 8, 256>}]} {
    %c0 = arith.constant 0 : index
    %c0_0 = arith.constant 0 : index
    %c0_1 = arith.constant 0 : index
    %0 = vector.load %arg3[%c0, %c0_0, %c0_1] : memref<1x8x36xf32, #tpu.memory_space<vmem>>, vector<1x8x36xf32>
    %1 = vector.shape_cast %0 : vector<1x8x36xf32> to vector<8x36xf32>
    %c0_2 = arith.constant 0 : index
    %c0_3 = arith.constant 0 : index
    %c0_4 = arith.constant 0 : index
    %c0_5 = arith.constant 0 : index
    %2 = vector.load %arg2[%c0_2, %c0_3, %c0_4, %c0_5] : memref<2x1x4x256xf32, #tpu.memory_space<vmem>>, vector<1x1x4x256xf32>
    %3 = vector.shape_cast %2 : vector<1x1x4x256xf32> to vector<4x256xf32>
    %4 = vector.extract_strided_slice %3 {offsets = [0, 239], sizes = [4, 17], strides = [1, 1]} : vector<4x256xf32> to vector<4x17xf32>
    %5 = vector.extract_strided_slice %3 {offsets = [0, 0], sizes = [4, 239], strides = [1, 1]} : vector<4x256xf32> to vector<4x239xf32>
    %6 = tpu.concatenate %4, %5 in 1 : vector<4x17xf32>, vector<4x239xf32> -> vector<4x256xf32>
    %c0_6 = arith.constant 0 : index
    %c0_7 = arith.constant 0 : index
    %c0_8 = arith.constant 0 : index
    %7 = vector.load %arg5[%c0_6, %c0_7, %c0_8] : memref<9x1x256xf32, #tpu.memory_space<vmem>>, vector<1x1x256xf32>
    %8 = vector.shape_cast %7 : vector<1x1x256xf32> to vector<1x256xf32>
    %9 = vector.broadcast %8 : vector<1x256xf32> to vector<4x256xf32>
    %10 = arith.mulf %6, %9 : vector<4x256xf32>
    %11 = vector.extract_strided_slice %3 {offsets = [0, 240], sizes = [4, 16], strides = [1, 1]} : vector<4x256xf32> to vector<4x16xf32>
    %12 = vector.extract_strided_slice %3 {offsets = [0, 0], sizes = [4, 240], strides = [1, 1]} : vector<4x256xf32> to vector<4x240xf32>
    %13 = tpu.concatenate %11, %12 in 1 : vector<4x16xf32>, vector<4x240xf32> -> vector<4x256xf32>
    %c1 = arith.constant 1 : index
    %c0_9 = arith.constant 0 : index
    %c0_10 = arith.constant 0 : index
    %14 = vector.load %arg5[%c1, %c0_9, %c0_10] : memref<9x1x256xf32, #tpu.memory_space<vmem>>, vector<1x1x256xf32>
    %15 = vector.shape_cast %14 : vector<1x1x256xf32> to vector<1x256xf32>
    %16 = vector.broadcast %15 : vector<1x256xf32> to vector<4x256xf32>
    %17 = arith.mulf %13, %16 : vector<4x256xf32>
    %18 = vector.extract_strided_slice %3 {offsets = [0, 241], sizes = [4, 15], strides = [1, 1]} : vector<4x256xf32> to vector<4x15xf32>
    %19 = vector.extract_strided_slice %3 {offsets = [0, 0], sizes = [4, 241], strides = [1, 1]} : vector<4x256xf32> to vector<4x241xf32>
    %20 = tpu.concatenate %18, %19 in 1 : vector<4x15xf32>, vector<4x241xf32> -> vector<4x256xf32>
    %c2 = arith.constant 2 : index
    %c0_11 = arith.constant 0 : index
    %c0_12 = arith.constant 0 : index
    %21 = vector.load %arg5[%c2, %c0_11, %c0_12] : memref<9x1x256xf32, #tpu.memory_space<vmem>>, vector<1x1x256xf32>
    %22 = vector.shape_cast %21 : vector<1x1x256xf32> to vector<1x256xf32>
    %23 = vector.broadcast %22 : vector<1x256xf32> to vector<4x256xf32>
    %24 = arith.mulf %20, %23 : vector<4x256xf32>
    %25 = vector.extract_strided_slice %3 {offsets = [0, 255], sizes = [4, 1], strides = [1, 1]} : vector<4x256xf32> to vector<4x1xf32>
    %26 = vector.extract_strided_slice %3 {offsets = [0, 0], sizes = [4, 255], strides = [1, 1]} : vector<4x256xf32> to vector<4x255xf32>
    %27 = tpu.concatenate %25, %26 in 1 : vector<4x1xf32>, vector<4x255xf32> -> vector<4x256xf32>
    %c3 = arith.constant 3 : index
    %c0_13 = arith.constant 0 : index
    %c0_14 = arith.constant 0 : index
    %28 = vector.load %arg5[%c3, %c0_13, %c0_14] : memref<9x1x256xf32, #tpu.memory_space<vmem>>, vector<1x1x256xf32>
    %29 = vector.shape_cast %28 : vector<1x1x256xf32> to vector<1x256xf32>
    %30 = vector.broadcast %29 : vector<1x256xf32> to vector<4x256xf32>
    %31 = arith.mulf %27, %30 : vector<4x256xf32>
    %c4 = arith.constant 4 : index
    %c0_15 = arith.constant 0 : index
    %c0_16 = arith.constant 0 : index
    %32 = vector.load %arg5[%c4, %c0_15, %c0_16] : memref<9x1x256xf32, #tpu.memory_space<vmem>>, vector<1x1x256xf32>
    %33 = vector.shape_cast %32 : vector<1x1x256xf32> to vector<1x256xf32>
    %34 = vector.broadcast %33 : vector<1x256xf32> to vector<4x256xf32>
    %35 = arith.mulf %3, %34 : vector<4x256xf32>
    %36 = vector.extract_strided_slice %3 {offsets = [0, 1], sizes = [4, 255], strides = [1, 1]} : vector<4x256xf32> to vector<4x255xf32>
    %37 = vector.extract_strided_slice %3 {offsets = [0, 0], sizes = [4, 1], strides = [1, 1]} : vector<4x256xf32> to vector<4x1xf32>
    %38 = tpu.concatenate %36, %37 in 1 : vector<4x255xf32>, vector<4x1xf32> -> vector<4x256xf32>
    %c5 = arith.constant 5 : index
    %c0_17 = arith.constant 0 : index
    %c0_18 = arith.constant 0 : index
    %39 = vector.load %arg5[%c5, %c0_17, %c0_18] : memref<9x1x256xf32, #tpu.memory_space<vmem>>, vector<1x1x256xf32>
    %40 = vector.shape_cast %39 : vector<1x1x256xf32> to vector<1x256xf32>
    %41 = vector.broadcast %40 : vector<1x256xf32> to vector<4x256xf32>
    %42 = arith.mulf %38, %41 : vector<4x256xf32>
    %43 = vector.extract_strided_slice %3 {offsets = [0, 15], sizes = [4, 241], strides = [1, 1]} : vector<4x256xf32> to vector<4x241xf32>
    %44 = vector.extract_strided_slice %3 {offsets = [0, 0], sizes = [4, 15], strides = [1, 1]} : vector<4x256xf32> to vector<4x15xf32>
    %45 = tpu.concatenate %43, %44 in 1 : vector<4x241xf32>, vector<4x15xf32> -> vector<4x256xf32>
    %c6 = arith.constant 6 : index
    %c0_19 = arith.constant 0 : index
    %c0_20 = arith.constant 0 : index
    %46 = vector.load %arg5[%c6, %c0_19, %c0_20] : memref<9x1x256xf32, #tpu.memory_space<vmem>>, vector<1x1x256xf32>
    %47 = vector.shape_cast %46 : vector<1x1x256xf32> to vector<1x256xf32>
    %48 = vector.broadcast %47 : vector<1x256xf32> to vector<4x256xf32>
    %49 = arith.mulf %45, %48 : vector<4x256xf32>
    %50 = vector.extract_strided_slice %3 {offsets = [0, 16], sizes = [4, 240], strides = [1, 1]} : vector<4x256xf32> to vector<4x240xf32>
    %51 = vector.extract_strided_slice %3 {offsets = [0, 0], sizes = [4, 16], strides = [1, 1]} : vector<4x256xf32> to vector<4x16xf32>
    %52 = tpu.concatenate %50, %51 in 1 : vector<4x240xf32>, vector<4x16xf32> -> vector<4x256xf32>
    %c7 = arith.constant 7 : index
    %c0_21 = arith.constant 0 : index
    %c0_22 = arith.constant 0 : index
    %53 = vector.load %arg5[%c7, %c0_21, %c0_22] : memref<9x1x256xf32, #tpu.memory_space<vmem>>, vector<1x1x256xf32>
    %54 = vector.shape_cast %53 : vector<1x1x256xf32> to vector<1x256xf32>
    %55 = vector.broadcast %54 : vector<1x256xf32> to vector<4x256xf32>
    %56 = arith.mulf %52, %55 : vector<4x256xf32>
    %57 = vector.extract_strided_slice %3 {offsets = [0, 17], sizes = [4, 239], strides = [1, 1]} : vector<4x256xf32> to vector<4x239xf32>
    %58 = vector.extract_strided_slice %3 {offsets = [0, 0], sizes = [4, 17], strides = [1, 1]} : vector<4x256xf32> to vector<4x17xf32>
    %59 = tpu.concatenate %57, %58 in 1 : vector<4x239xf32>, vector<4x17xf32> -> vector<4x256xf32>
    %c8 = arith.constant 8 : index
    %c0_23 = arith.constant 0 : index
    %c0_24 = arith.constant 0 : index
    %60 = vector.load %arg5[%c8, %c0_23, %c0_24] : memref<9x1x256xf32, #tpu.memory_space<vmem>>, vector<1x1x256xf32>
    %61 = vector.shape_cast %60 : vector<1x1x256xf32> to vector<1x256xf32>
    %62 = vector.broadcast %61 : vector<1x256xf32> to vector<4x256xf32>
    %63 = arith.mulf %59, %62 : vector<4x256xf32>
    %64 = tpu.concatenate %10, %17, %24, %31, %35, %42, %49, %56, %63 in 0 : vector<4x256xf32>, vector<4x256xf32>, vector<4x256xf32>, vector<4x256xf32>, vector<4x256xf32>, vector<4x256xf32>, vector<4x256xf32>, vector<4x256xf32>, vector<4x256xf32> -> vector<36x256xf32>
    %c1_25 = arith.constant 1 : index
    %c0_26 = arith.constant 0 : index
    %c0_27 = arith.constant 0 : index
    %c0_28 = arith.constant 0 : index
    %65 = vector.load %arg2[%c1_25, %c0_26, %c0_27, %c0_28] : memref<2x1x4x256xf32, #tpu.memory_space<vmem>>, vector<1x1x4x256xf32>
    %66 = vector.shape_cast %65 : vector<1x1x4x256xf32> to vector<4x256xf32>
    %67 = vector.extract_strided_slice %66 {offsets = [0, 239], sizes = [4, 17], strides = [1, 1]} : vector<4x256xf32> to vector<4x17xf32>
    %68 = vector.extract_strided_slice %66 {offsets = [0, 0], sizes = [4, 239], strides = [1, 1]} : vector<4x256xf32> to vector<4x239xf32>
    %69 = tpu.concatenate %67, %68 in 1 : vector<4x17xf32>, vector<4x239xf32> -> vector<4x256xf32>
    %c0_29 = arith.constant 0 : index
    %c0_30 = arith.constant 0 : index
    %c0_31 = arith.constant 0 : index
    %70 = vector.load %arg5[%c0_29, %c0_30, %c0_31] : memref<9x1x256xf32, #tpu.memory_space<vmem>>, vector<1x1x256xf32>
    %71 = vector.shape_cast %70 : vector<1x1x256xf32> to vector<1x256xf32>
    %72 = vector.broadcast %71 : vector<1x256xf32> to vector<4x256xf32>
    %73 = arith.mulf %69, %72 : vector<4x256xf32>
    %74 = vector.extract_strided_slice %66 {offsets = [0, 240], sizes = [4, 16], strides = [1, 1]} : vector<4x256xf32> to vector<4x16xf32>
    %75 = vector.extract_strided_slice %66 {offsets = [0, 0], sizes = [4, 240], strides = [1, 1]} : vector<4x256xf32> to vector<4x240xf32>
    %76 = tpu.concatenate %74, %75 in 1 : vector<4x16xf32>, vector<4x240xf32> -> vector<4x256xf32>
    %c1_32 = arith.constant 1 : index
    %c0_33 = arith.constant 0 : index
    %c0_34 = arith.constant 0 : index
    %77 = vector.load %arg5[%c1_32, %c0_33, %c0_34] : memref<9x1x256xf32, #tpu.memory_space<vmem>>, vector<1x1x256xf32>
    %78 = vector.shape_cast %77 : vector<1x1x256xf32> to vector<1x256xf32>
    %79 = vector.broadcast %78 : vector<1x256xf32> to vector<4x256xf32>
    %80 = arith.mulf %76, %79 : vector<4x256xf32>
    %81 = vector.extract_strided_slice %66 {offsets = [0, 241], sizes = [4, 15], strides = [1, 1]} : vector<4x256xf32> to vector<4x15xf32>
    %82 = vector.extract_strided_slice %66 {offsets = [0, 0], sizes = [4, 241], strides = [1, 1]} : vector<4x256xf32> to vector<4x241xf32>
    %83 = tpu.concatenate %81, %82 in 1 : vector<4x15xf32>, vector<4x241xf32> -> vector<4x256xf32>
    %c2_35 = arith.constant 2 : index
    %c0_36 = arith.constant 0 : index
    %c0_37 = arith.constant 0 : index
    %84 = vector.load %arg5[%c2_35, %c0_36, %c0_37] : memref<9x1x256xf32, #tpu.memory_space<vmem>>, vector<1x1x256xf32>
    %85 = vector.shape_cast %84 : vector<1x1x256xf32> to vector<1x256xf32>
    %86 = vector.broadcast %85 : vector<1x256xf32> to vector<4x256xf32>
    %87 = arith.mulf %83, %86 : vector<4x256xf32>
    %88 = vector.extract_strided_slice %66 {offsets = [0, 255], sizes = [4, 1], strides = [1, 1]} : vector<4x256xf32> to vector<4x1xf32>
    %89 = vector.extract_strided_slice %66 {offsets = [0, 0], sizes = [4, 255], strides = [1, 1]} : vector<4x256xf32> to vector<4x255xf32>
    %90 = tpu.concatenate %88, %89 in 1 : vector<4x1xf32>, vector<4x255xf32> -> vector<4x256xf32>
    %c3_38 = arith.constant 3 : index
    %c0_39 = arith.constant 0 : index
    %c0_40 = arith.constant 0 : index
    %91 = vector.load %arg5[%c3_38, %c0_39, %c0_40] : memref<9x1x256xf32, #tpu.memory_space<vmem>>, vector<1x1x256xf32>
    %92 = vector.shape_cast %91 : vector<1x1x256xf32> to vector<1x256xf32>
    %93 = vector.broadcast %92 : vector<1x256xf32> to vector<4x256xf32>
    %94 = arith.mulf %90, %93 : vector<4x256xf32>
    %c4_41 = arith.constant 4 : index
    %c0_42 = arith.constant 0 : index
    %c0_43 = arith.constant 0 : index
    %95 = vector.load %arg5[%c4_41, %c0_42, %c0_43] : memref<9x1x256xf32, #tpu.memory_space<vmem>>, vector<1x1x256xf32>
    %96 = vector.shape_cast %95 : vector<1x1x256xf32> to vector<1x256xf32>
    %97 = vector.broadcast %96 : vector<1x256xf32> to vector<4x256xf32>
    %98 = arith.mulf %66, %97 : vector<4x256xf32>
    %99 = vector.extract_strided_slice %66 {offsets = [0, 1], sizes = [4, 255], strides = [1, 1]} : vector<4x256xf32> to vector<4x255xf32>
    %100 = vector.extract_strided_slice %66 {offsets = [0, 0], sizes = [4, 1], strides = [1, 1]} : vector<4x256xf32> to vector<4x1xf32>
    %101 = tpu.concatenate %99, %100 in 1 : vector<4x255xf32>, vector<4x1xf32> -> vector<4x256xf32>
    %c5_44 = arith.constant 5 : index
    %c0_45 = arith.constant 0 : index
    %c0_46 = arith.constant 0 : index
    %102 = vector.load %arg5[%c5_44, %c0_45, %c0_46] : memref<9x1x256xf32, #tpu.memory_space<vmem>>, vector<1x1x256xf32>
    %103 = vector.shape_cast %102 : vector<1x1x256xf32> to vector<1x256xf32>
    %104 = vector.broadcast %103 : vector<1x256xf32> to vector<4x256xf32>
    %105 = arith.mulf %101, %104 : vector<4x256xf32>
    %106 = vector.extract_strided_slice %66 {offsets = [0, 15], sizes = [4, 241], strides = [1, 1]} : vector<4x256xf32> to vector<4x241xf32>
    %107 = vector.extract_strided_slice %66 {offsets = [0, 0], sizes = [4, 15], strides = [1, 1]} : vector<4x256xf32> to vector<4x15xf32>
    %108 = tpu.concatenate %106, %107 in 1 : vector<4x241xf32>, vector<4x15xf32> -> vector<4x256xf32>
    %c6_47 = arith.constant 6 : index
    %c0_48 = arith.constant 0 : index
    %c0_49 = arith.constant 0 : index
    %109 = vector.load %arg5[%c6_47, %c0_48, %c0_49] : memref<9x1x256xf32, #tpu.memory_space<vmem>>, vector<1x1x256xf32>
    %110 = vector.shape_cast %109 : vector<1x1x256xf32> to vector<1x256xf32>
    %111 = vector.broadcast %110 : vector<1x256xf32> to vector<4x256xf32>
    %112 = arith.mulf %108, %111 : vector<4x256xf32>
    %113 = vector.extract_strided_slice %66 {offsets = [0, 16], sizes = [4, 240], strides = [1, 1]} : vector<4x256xf32> to vector<4x240xf32>
    %114 = vector.extract_strided_slice %66 {offsets = [0, 0], sizes = [4, 16], strides = [1, 1]} : vector<4x256xf32> to vector<4x16xf32>
    %115 = tpu.concatenate %113, %114 in 1 : vector<4x240xf32>, vector<4x16xf32> -> vector<4x256xf32>
    %c7_50 = arith.constant 7 : index
    %c0_51 = arith.constant 0 : index
    %c0_52 = arith.constant 0 : index
    %116 = vector.load %arg5[%c7_50, %c0_51, %c0_52] : memref<9x1x256xf32, #tpu.memory_space<vmem>>, vector<1x1x256xf32>
    %117 = vector.shape_cast %116 : vector<1x1x256xf32> to vector<1x256xf32>
    %118 = vector.broadcast %117 : vector<1x256xf32> to vector<4x256xf32>
    %119 = arith.mulf %115, %118 : vector<4x256xf32>
    %120 = vector.extract_strided_slice %66 {offsets = [0, 17], sizes = [4, 239], strides = [1, 1]} : vector<4x256xf32> to vector<4x239xf32>
    %121 = vector.extract_strided_slice %66 {offsets = [0, 0], sizes = [4, 17], strides = [1, 1]} : vector<4x256xf32> to vector<4x17xf32>
    %122 = tpu.concatenate %120, %121 in 1 : vector<4x239xf32>, vector<4x17xf32> -> vector<4x256xf32>
    %c8_53 = arith.constant 8 : index
    %c0_54 = arith.constant 0 : index
    %c0_55 = arith.constant 0 : index
    %123 = vector.load %arg5[%c8_53, %c0_54, %c0_55] : memref<9x1x256xf32, #tpu.memory_space<vmem>>, vector<1x1x256xf32>
    %124 = vector.shape_cast %123 : vector<1x1x256xf32> to vector<1x256xf32>
    %125 = vector.broadcast %124 : vector<1x256xf32> to vector<4x256xf32>
    %126 = arith.mulf %122, %125 : vector<4x256xf32>
    %127 = tpu.concatenate %73, %80, %87, %94, %98, %105, %112, %119, %126 in 0 : vector<4x256xf32>, vector<4x256xf32>, vector<4x256xf32>, vector<4x256xf32>, vector<4x256xf32>, vector<4x256xf32>, vector<4x256xf32>, vector<4x256xf32>, vector<4x256xf32> -> vector<36x256xf32>
    %128 = tpu.concatenate %64, %127 in 1 : vector<36x256xf32>, vector<36x256xf32> -> vector<36x512xf32>
    %cst = arith.constant dense<0.000000e+00> : vector<8x512xf32>
    %129 = tpu.matmul %1, %128, %cst {dimension_numbers = #tpu.dot_dimension_numbers<[1], [0], [0], [1], [0, 0, 1, 1], [], []>} : vector<8x36xf32>, vector<36x512xf32>, vector<8x512xf32> -> vector<8x512xf32>
    %c0_56 = arith.constant 0 : index
    %c0_57 = arith.constant 0 : index
    %c0_58 = arith.constant 0 : index
    %130 = vector.load %arg4[%c0_56, %c0_57, %c0_58] : memref<1x8x3xf32, #tpu.memory_space<vmem>>, vector<1x8x3xf32>
    %131 = vector.shape_cast %130 : vector<1x8x3xf32> to vector<8x3xf32>
    %132 = vector.extract_strided_slice %131 {offsets = [0, 0], sizes = [8, 1], strides = [1, 1]} : vector<8x3xf32> to vector<8x1xf32>
    %133 = vector.broadcast %132 : vector<8x1xf32> to vector<8x512xf32>
    %134 = arith.addf %129, %133 : vector<8x512xf32>
    %135 = vector.extract_strided_slice %134 {offsets = [0, 0], sizes = [8, 256], strides = [1, 1]} : vector<8x512xf32> to vector<8x256xf32>
    %136 = vector.shape_cast %135 : vector<8x256xf32> to vector<1x8x256xf32>
    %cst_59 = arith.constant dense<0.000000e+00> : vector<1xf32>
    %137 = vector.multi_reduction <add>, %136, %cst_59 [1, 2] : vector<1x8x256xf32> to vector<1xf32>
    %138 = vector.shape_cast %137 : vector<1xf32> to vector<1x1x1xf32>
    %139 = vector.extract %138[0, 0, 0] : f32 from vector<1x1x1xf32>
    %cst_60 = arith.constant 2.048000e+03 : f32
    %140 = arith.divf %139, %cst_60 : f32
    %141 = vector.broadcast %140 : f32 to vector<8x256xf32>
    %142 = arith.subf %135, %141 : vector<8x256xf32>
    %143 = arith.mulf %142, %142 : vector<8x256xf32>
    %144 = vector.shape_cast %143 : vector<8x256xf32> to vector<1x8x256xf32>
    %cst_61 = arith.constant dense<0.000000e+00> : vector<1xf32>
    %145 = vector.multi_reduction <add>, %144, %cst_61 [1, 2] : vector<1x8x256xf32> to vector<1xf32>
    %146 = vector.shape_cast %145 : vector<1xf32> to vector<1x1x1xf32>
    %147 = vector.extract %146[0, 0, 0] : f32 from vector<1x1x1xf32>
    %cst_62 = arith.constant 2.048000e+03 : f32
    %148 = arith.divf %147, %cst_62 : f32
    %cst_63 = arith.constant 9.99999974E-6 : f32
    %149 = arith.addf %148, %cst_63 : f32
    %150 = math.rsqrt %149 : f32
    %151 = vector.extract_strided_slice %131 {offsets = [0, 1], sizes = [8, 1], strides = [1, 1]} : vector<8x3xf32> to vector<8x1xf32>
    %152 = vector.broadcast %150 : f32 to vector<8x1xf32>
    %153 = arith.mulf %151, %152 : vector<8x1xf32>
    %154 = vector.extract_strided_slice %131 {offsets = [0, 2], sizes = [8, 1], strides = [1, 1]} : vector<8x3xf32> to vector<8x1xf32>
    %155 = vector.broadcast %140 : f32 to vector<8x1xf32>
    %156 = arith.mulf %155, %153 : vector<8x1xf32>
    %157 = arith.subf %154, %156 : vector<8x1xf32>
    %158 = vector.broadcast %153 : vector<8x1xf32> to vector<8x256xf32>
    %159 = arith.mulf %135, %158 : vector<8x256xf32>
    %160 = vector.broadcast %157 : vector<8x1xf32> to vector<8x256xf32>
    %161 = arith.addf %159, %160 : vector<8x256xf32>
    %cst_64 = arith.constant 2.000000e-01 : f32
    %162 = vector.broadcast %cst_64 : f32 to vector<8x256xf32>
    %163 = arith.mulf %162, %161 : vector<8x256xf32>
    %164 = arith.maximumf %161, %163 : vector<8x256xf32>
    %c0_65 = arith.constant 0 : index
    %c0_66 = arith.constant 0 : index
    %c0_67 = arith.constant 0 : index
    %c0_68 = arith.constant 0 : index
    %165 = vector.load %arg6[%c0_65, %c0_66, %c0_67, %c0_68] : memref<2x1x8x256xf32, #tpu.memory_space<vmem>>, vector<1x1x8x256xf32>
    %166 = vector.shape_cast %165 : vector<1x1x8x256xf32> to vector<8x256xf32>
    %167 = vector.shape_cast %164 : vector<8x256xf32> to vector<1x1x8x256xf32>
    tpu.vector_store %arg6[%c0_65, %c0_66, %c0_67, %c0_68], %167 {strides = array<i32>} : memref<2x1x8x256xf32, #tpu.memory_space<vmem>>, vector<1x1x8x256xf32>,
    %168 = vector.extract_strided_slice %134 {offsets = [0, 256], sizes = [8, 256], strides = [1, 1]} : vector<8x512xf32> to vector<8x256xf32>
    %169 = vector.shape_cast %168 : vector<8x256xf32> to vector<1x8x256xf32>
    %cst_69 = arith.constant dense<0.000000e+00> : vector<1xf32>
    %170 = vector.multi_reduction <add>, %169, %cst_69 [1, 2] : vector<1x8x256xf32> to vector<1xf32>
    %171 = vector.shape_cast %170 : vector<1xf32> to vector<1x1x1xf32>
    %172 = vector.extract %171[0, 0, 0] : f32 from vector<1x1x1xf32>
    %cst_70 = arith.constant 2.048000e+03 : f32
    %173 = arith.divf %172, %cst_70 : f32
    %174 = vector.broadcast %173 : f32 to vector<8x256xf32>
    %175 = arith.subf %168, %174 : vector<8x256xf32>
    %176 = arith.mulf %175, %175 : vector<8x256xf32>
    %177 = vector.shape_cast %176 : vector<8x256xf32> to vector<1x8x256xf32>
    %cst_71 = arith.constant dense<0.000000e+00> : vector<1xf32>
    %178 = vector.multi_reduction <add>, %177, %cst_71 [1, 2] : vector<1x8x256xf32> to vector<1xf32>
    %179 = vector.shape_cast %178 : vector<1xf32> to vector<1x1x1xf32>
    %180 = vector.extract %179[0, 0, 0] : f32 from vector<1x1x1xf32>
    %cst_72 = arith.constant 2.048000e+03 : f32
    %181 = arith.divf %180, %cst_72 : f32
    %cst_73 = arith.constant 9.99999974E-6 : f32
    %182 = arith.addf %181, %cst_73 : f32
    %183 = math.rsqrt %182 : f32
    %184 = vector.extract_strided_slice %131 {offsets = [0, 1], sizes = [8, 1], strides = [1, 1]} : vector<8x3xf32> to vector<8x1xf32>
    %185 = vector.broadcast %183 : f32 to vector<8x1xf32>
    %186 = arith.mulf %184, %185 : vector<8x1xf32>
    %187 = vector.extract_strided_slice %131 {offsets = [0, 2], sizes = [8, 1], strides = [1, 1]} : vector<8x3xf32> to vector<8x1xf32>
    %188 = vector.broadcast %173 : f32 to vector<8x1xf32>
    %189 = arith.mulf %188, %186 : vector<8x1xf32>
    %190 = arith.subf %187, %189 : vector<8x1xf32>
    %191 = vector.broadcast %186 : vector<8x1xf32> to vector<8x256xf32>
    %192 = arith.mulf %168, %191 : vector<8x256xf32>
    %193 = vector.broadcast %190 : vector<8x1xf32> to vector<8x256xf32>
    %194 = arith.addf %192, %193 : vector<8x256xf32>
    %cst_74 = arith.constant 2.000000e-01 : f32
    %195 = vector.broadcast %cst_74 : f32 to vector<8x256xf32>
    %196 = arith.mulf %195, %194 : vector<8x256xf32>
    %197 = arith.maximumf %194, %196 : vector<8x256xf32>
    %c1_75 = arith.constant 1 : index
    %c0_76 = arith.constant 0 : index
    %c0_77 = arith.constant 0 : index
    %c0_78 = arith.constant 0 : index
    %198 = vector.load %arg6[%c1_75, %c0_76, %c0_77, %c0_78] : memref<2x1x8x256xf32, #tpu.memory_space<vmem>>, vector<1x1x8x256xf32>
    %199 = vector.shape_cast %198 : vector<1x1x8x256xf32> to vector<8x256xf32>
    %200 = vector.shape_cast %197 : vector<8x256xf32> to vector<1x1x8x256xf32>
    tpu.vector_store %arg6[%c1_75, %c0_76, %c0_77, %c0_78], %200 {strides = array<i32>} : memref<2x1x8x256xf32, #tpu.memory_space<vmem>>, vector<1x1x8x256xf32>,
    return
  }
  func.func @transform_0(%arg0: i32, %arg1: i32) -> (i32, i32, i32, i32) {
    %c0_i32 = arith.constant 0 : i32
    %c0_i32_0 = arith.constant 0 : i32
    %c0_i32_1 = arith.constant 0 : i32
    return %arg1, %arg0, %c0_i32, %c0_i32_0 : i32, i32, i32, i32
  }
  func.func @transform_1(%arg0: i32, %arg1: i32) -> (i32, i32, i32) {
    %c0_i32 = arith.constant 0 : i32
    %c0_i32_0 = arith.constant 0 : i32
    %c0_i32_1 = arith.constant 0 : i32
    return %arg0, %c0_i32, %c0_i32_0 : i32, i32, i32
  }
  func.func @transform_2(%arg0: i32, %arg1: i32) -> (i32, i32, i32) {
    %c0_i32 = arith.constant 0 : i32
    %c0_i32_0 = arith.constant 0 : i32
    %c0_i32_1 = arith.constant 0 : i32
    return %arg0, %c0_i32, %c0_i32_0 : i32, i32, i32
  }
  func.func @transform_3(%arg0: i32, %arg1: i32) -> (i32, i32, i32) {
    %c0_i32 = arith.constant 0 : i32
    %c0_i32_0 = arith.constant 0 : i32
    %c0_i32_1 = arith.constant 0 : i32
    %c0_i32_2 = arith.constant 0 : i32
    return %c0_i32, %c0_i32_0, %c0_i32_1 : i32, i32, i32
  }
  func.func @transform_4(%arg0: i32, %arg1: i32) -> (i32, i32, i32, i32) {
    %c0_i32 = arith.constant 0 : i32
    %c0_i32_0 = arith.constant 0 : i32
    %c0_i32_1 = arith.constant 0 : i32
    return %arg1, %arg0, %c0_i32, %c0_i32_0 : i32, i32, i32, i32
  }
}

</mosaic_0001>

<llo_original>
// kernel: tpu_custom_call.1
$region0: #{tpu_custom_call.1}
  #allocation0 [shape = 'u32[]', space=smem, size = 0x4, offset = 0x4, fixed_abs, tag = 'smem constant byte address 0x4 - core index']
  #allocation1 [shape = 'u32[72,128]{1,0:T(1,128)}', space=vmem, size = 0x9000, scoped, tag = 'internal scratch']
  %s0 = inlined_call_operand.hbm [shape: f32[2,2,4,256], index: 0, kind: input, shape index: {}]
  %s1 = inlined_call_operand.hbm [shape: f32[2,8,36], index: 1, kind: input, shape index: {}]
  %s2 = inlined_call_operand.vmem [shape: f32[2,8,3], index: 2, kind: input, shape index: {}]
  %s3 = inlined_call_operand.vmem [shape: f32[9,1,256], index: 3, kind: input, shape index: {}]
  %s4 = inlined_call_operand.hbm [shape: f32[2,2,8,256], index: 4, kind: output, shape index: {}]
  %s5 = sld [smem:[#allocation0]]
  $region57: #{tpu_custom_call.1} parent=0
    _
  %s7 = ssub.s32 1, %s5
  %s8 = scalar_select 0, %s7, %s5
  $region1: #{tpu_custom_call.1} parent=0
    #allocation2 [shape = 'u8[16384]{0}', space=vmem, size = 0x4000, scoped, tag = 'input window, operand 0']
    #allocation3 [shape = 's32[2]{0}', space=sflag, size = 0x8, scoped, tag = 'scoped memory for tpu_custom_call.1']
    #allocation4 [shape = 's32[2]{0}', space=sflag, size = 0x8, scoped, tag = 'scoped memory for tpu_custom_call.1']
    #allocation5 [shape = 'u8[8192]{0}', space=vmem, size = 0x2000, scoped, tag = 'input window, operand 1']
    #allocation6 [shape = 's32[2]{0}', space=sflag, size = 0x8, scoped, tag = 'scoped memory for tpu_custom_call.1']
    #allocation7 [shape = 'u8[32768]{0}', space=vmem, size = 0x8000, scoped, tag = 'output window, operand 0']
    %9 = vsyncpa [#allocation3], 0
    %s10 = scalar_lea.sflag [#allocation3], 1
    %11 = vsyncpa %s10, 0
    %12 = vsyncpa [#allocation6], 0
    %s13 = scalar_lea.sflag [#allocation6], 1
    %14 = vsyncpa %s13, 0
    %15 = vsyncpa [#allocation4], 0
    %s16 = scalar_lea.sflag [#allocation4], 1
    %17 = vsyncpa %s16, 0
    loop: start=0, step=1, limit=4
    $region2: #{tpu_custom_call.1} parent=1 // loop_pre_header
      _
    $region3: #{tpu_custom_call.1} parent=1 // loop_header
      %s19 = sphi 0, %s23
      %p20 = scmp.ge.s32.totalorder %s19, 4
      %s26 = sphi 0, %s38
      %s27 = sphi 0, %s34
      %s28 = sphi 0, %s26
      %s29 = sphi 0, %s27
      %s30 = sphi 0, %s28
      %s31 = sphi 0, %s29
      %s43 = sphi 0, %s45
      %s46 = sphi 0, %s43
      %s47 = sphi 0, %s46
      %s63 = sphi 0, %s47
      %s69 = sphi 0, %s71
      %s72 = sphi 0, %s69
      %s73 = sphi 0, %s72
      %s89 = sphi 0, %s73
      %s95 = sphi 0, %s97
      %s98 = sphi 0, %s95
      %s99 = sphi 0, %s98
      %s115 = sphi 0, %s99
      %s119 = sphi 0, %s119
      %s121 = sphi 0, %s119
      %s122 = sphi 0, %s121
      %s136 = sphi 0, %s122
      %s144 = sphi 0, %s146
      %s147 = sphi 0, %s144
      %s148 = sphi 0, %s147
      %s164 = sphi 0, %s148
    $region4: #{tpu_custom_call.1} parent=1 // loop_header_branch
      %22 = sbr.rel (%p20) target = $region8
    $region5: #{tpu_custom_call.1} parent=1 // loop_body
      %s24 = ssub.s32 %s19, 1
      %s25 = ssub.s32 %s19, 2
      %s32 = sadd.s32 1, %s27
      %p33 = scmp.ge.s32.totalorder %s32, 1
      %s34 = scalar_select %p33, 0, %s32
      %s35 = sadd.s32 1, %s26
      %s36 = scalar_select %p33, %s35, %s26
      %p37 = scmp.ge.s32.totalorder %s36, 2
      %s38 = scalar_select %p37, 0, %s36
      %s39 = ssub.s32 %s27, %s34
      %s40 = ssub.s32 %s26, %s38
      %s41 = sor.u32 %s39, %s40
      %p42 = scmp.eq.s32.totalorder %s41, 0
      %s44 = sadd.s32 %s43, 1
      %s45 = scalar_select %p42, %s43, %s44
      %p48 = pneg %p42
      %p49 = scmp.eq.s32.totalorder %s19, 1
      %p50 = por %p48, %p49
      %p51 = scmp.ne.s32.totalorder %s43, %s46
      %p52 = scmp.eq.s32.totalorder %s19, 0
      %p53 = por %p51, %p52
      %p54 = scmp.ne.s32.totalorder %s43, %s46
      %p55 = scmp.eq.s32.totalorder %s24, 1
      %p56 = por %p54, %p55
      %p57 = scmp.ne.s32.totalorder %s46, %s47
      %p58 = scmp.eq.s32.totalorder %s24, 0
      %p59 = por %p57, %p58
      %p60 = scmp.ne.s32.totalorder %s46, %s47
      %p61 = scmp.eq.s32.totalorder %s25, 1
      %p62 = por %p60, %p61
      %p64 = scmp.ne.s32.totalorder %s47, %s63
      %p65 = scmp.eq.s32.totalorder %s25, 0
      %p66 = por %p64, %p65
      %s67 = ssub.s32 %s26, %s38
      %p68 = scmp.eq.s32.totalorder %s67, 0
      %s70 = sadd.s32 %s69, 1
      %s71 = scalar_select %p68, %s69, %s70
      %p74 = pneg %p68
      %p75 = scmp.eq.s32.totalorder %s19, 1
      %p76 = por %p74, %p75
      %p77 = scmp.ne.s32.totalorder %s69, %s72
      %p78 = scmp.eq.s32.totalorder %s19, 0
      %p79 = por %p77, %p78
      %p80 = scmp.ne.s32.totalorder %s69, %s72
      %p81 = scmp.eq.s32.totalorder %s24, 1
      %p82 = por %p80, %p81
      %p83 = scmp.ne.s32.totalorder %s72, %s73
      %p84 = scmp.eq.s32.totalorder %s24, 0
      %p85 = por %p83, %p84
      %p86 = scmp.ne.s32.totalorder %s72, %s73
      %p87 = scmp.eq.s32.totalorder %s25, 1
      %p88 = por %p86, %p87
      %p90 = scmp.ne.s32.totalorder %s73, %s89
      %p91 = scmp.eq.s32.totalorder %s25, 0
      %p92 = por %p90, %p91
      %s93 = ssub.s32 %s26, %s38
      %p94 = scmp.eq.s32.totalorder %s93, 0
      %s96 = sadd.s32 %s95, 1
      %s97 = scalar_select %p94, %s95, %s96
      %p100 = pneg %p94
      %p101 = scmp.eq.s32.totalorder %s19, 1
      %p102 = por %p100, %p101
      %p103 = scmp.ne.s32.totalorder %s95, %s98
      %p104 = scmp.eq.s32.totalorder %s19, 0
      %p105 = por %p103, %p104
      %p106 = scmp.ne.s32.totalorder %s95, %s98
      %p107 = scmp.eq.s32.totalorder %s24, 1
      %p108 = por %p106, %p107
      %p109 = scmp.ne.s32.totalorder %s98, %s99
      %p110 = scmp.eq.s32.totalorder %s24, 0
      %p111 = por %p109, %p110
      %p112 = scmp.ne.s32.totalorder %s98, %s99
      %p113 = scmp.eq.s32.totalorder %s25, 1
      %p114 = por %p112, %p113
      %p116 = scmp.ne.s32.totalorder %s99, %s115
      %p117 = scmp.eq.s32.totalorder %s25, 0
      %p118 = por %p116, %p117
      %s120 = sadd.s32 %s119, 1
      %p123 = scmp.eq.s32.totalorder %s19, 1
      %p124 = scmp.ne.s32.totalorder %s119, %s121
      %p125 = scmp.eq.s32.totalorder %s19, 0
      %p126 = por %p124, %p125
      %p127 = scmp.ne.s32.totalorder %s119, %s121
      %p128 = scmp.eq.s32.totalorder %s24, 1
      %p129 = por %p127, %p128
      %p130 = scmp.ne.s32.totalorder %s121, %s122
      %p131 = scmp.eq.s32.totalorder %s24, 0
      %p132 = por %p130, %p131
      %p133 = scmp.ne.s32.totalorder %s121, %s122
      %p134 = scmp.eq.s32.totalorder %s25, 1
      %p135 = por %p133, %p134
      %p137 = scmp.ne.s32.totalorder %s122, %s136
      %p138 = scmp.eq.s32.totalorder %s25, 0
      %p139 = por %p137, %p138
      %s140 = ssub.s32 %s27, %s34
      %s141 = ssub.s32 %s26, %s38
      %s142 = sor.u32 %s140, %s141
      %p143 = scmp.eq.s32.totalorder %s142, 0
      %s145 = sadd.s32 %s144, 1
      %s146 = scalar_select %p143, %s144, %s145
      %p149 = pneg %p143
      %p150 = scmp.eq.s32.totalorder %s19, 1
      %p151 = por %p149, %p150
      %p152 = scmp.ne.s32.totalorder %s144, %s147
      %p153 = scmp.eq.s32.totalorder %s19, 0
      %p154 = por %p152, %p153
      %p155 = scmp.ne.s32.totalorder %s144, %s147
      %p156 = scmp.eq.s32.totalorder %s24, 1
      %p157 = por %p155, %p156
      %p158 = scmp.ne.s32.totalorder %s147, %s148
      %p159 = scmp.eq.s32.totalorder %s24, 0
      %p160 = por %p158, %p159
      %p161 = scmp.ne.s32.totalorder %s147, %s148
      %p162 = scmp.eq.s32.totalorder %s25, 1
      %p163 = por %p161, %p162
      %p165 = scmp.ne.s32.totalorder %s148, %s164
      %p166 = scmp.eq.s32.totalorder %s25, 0
      %p167 = por %p165, %p166
      %p168 = scmp.le.s32.totalorder 1, %s19
      %p169 = scmp.lt.s32.totalorder %s19, 3
      %p170 = pnand %p168, %p169
      %p171 = pneg %p170
      // Predicated region
      $region9: #{tpu_custom_call.1} parent=5 // pred_check
        _
      $region10: #{tpu_custom_call.1} parent=5 // pred_check_branch
        %173 = sbr.rel (%p170) target = $region12
      $region11: #{tpu_custom_call.1} parent=5 // pred_region
        %s174 = ssub.s32 %s19, 1
        // Predicated region
        $region13: #{tpu_custom_call.1} parent=11 // pred_check
          %p175 = pneg %p132
        $region14: #{tpu_custom_call.1} parent=11 // pred_check_branch
          %177 = sbr.rel (%p175) target = $region16
        $region15: #{tpu_custom_call.1} parent=11 // pred_region
          _
        $region16: #{tpu_custom_call.1} parent=11 // pred_fallthru
          _
      $region12: #{tpu_custom_call.1} parent=5 // pred_fallthru
        _
      %p178 = scmp.lt.s32.totalorder %s19, 2
      // Predicated region
      $region17: #{tpu_custom_call.1} parent=5 // pred_check
        %p179 = pneg %p178
      $region18: #{tpu_custom_call.1} parent=5 // pred_check_branch
        %181 = sbr.rel (%p179) target = $region20
      $region19: #{tpu_custom_call.1} parent=5 // pred_region
        // Predicated region
        $region21: #{tpu_custom_call.1} parent=19 // pred_check
          %p182 = pneg %p53
        $region22: #{tpu_custom_call.1} parent=19 // pred_check_branch
          %184 = sbr.rel (%p182) target = $region24
        $region23: #{tpu_custom_call.1} parent=19 // pred_region
          %s185 = sand.u32 %s43, 1
          %s186 = scalar_lea.sflag [#allocation3], %s185
          %s187 = sand.u32 %s43, 1
          %s188 = smul.addr %s187, 16
          %s189 = scalar_lea.vmem [#allocation2], %s188
          %s190 = smul.u32 2, %s27
          %192 = vsyncadd %s186, 0
          %s193 = smul.addr %s26, 2
          %s194 = smul.addr %s190, 4
          %s195 = sadd.s32 %s193, %s194
          %s196 = smul.addr %s195, 4
          %s197 = scalar_lea.hbm %s0, %s196
          %s198 = sshll.u32 %s197, 4
          %s199 = int_to_ptr.hbm [resolvable:$true] %s198
          %s200 = sshll.u32 %s189, 4
          %s201 = int_to_ptr.vmem [resolvable:$true] %s200
          %206 = dma.hbm_to_vmem [thread:$0]  %s199, 256, %s201, %s186, 256, 128, 8
        $region24: #{tpu_custom_call.1} parent=19 // pred_fallthru
          _
        // Predicated region
        $region25: #{tpu_custom_call.1} parent=19 // pred_check
          %p207 = pneg %p79
        $region26: #{tpu_custom_call.1} parent=19 // pred_check_branch
          %209 = sbr.rel (%p207) target = $region28
        $region27: #{tpu_custom_call.1} parent=19 // pred_region
          %s210 = sand.u32 %s69, 1
          %s211 = scalar_lea.sflag [#allocation6], %s210
          %s212 = sand.u32 %s69, 1
          %s213 = smul.addr %s212, 8
          %s214 = scalar_lea.vmem [#allocation5], %s213
          %216 = vsyncadd %s211, 0
          %s217 = smul.addr %s26, 8
          %s218 = scalar_lea.hbm %s1, %s217
          %s220 = sshll.u32 %s218, 4
          %s221 = int_to_ptr.hbm [resolvable:$true] %s220
          %s222 = sshll.u32 %s214, 4
          %s223 = int_to_ptr.vmem [resolvable:$true] %s222
          %225 = dma.hbm_to_vmem [thread:$0]  %s221, 128, %s223, %s211
        $region28: #{tpu_custom_call.1} parent=19 // pred_fallthru
          _
        // Predicated region
        $region29: #{tpu_custom_call.1} parent=19 // pred_check
          %p226 = pneg %p105
        $region30: #{tpu_custom_call.1} parent=19 // pred_check_branch
          %228 = sbr.rel (%p226) target = $region32
        $region31: #{tpu_custom_call.1} parent=19 // pred_region
          %p229 = scmp.lt.s32.totalorder %s26, 1
          %s230 = scalar_select %p229, %s26, 1
          %s231 = smul.addr %s230, 8
          %s232 = scalar_lea.vmem %s2, %s231
        $region32: #{tpu_custom_call.1} parent=19 // pred_fallthru
          _
      $region20: #{tpu_custom_call.1} parent=5 // pred_fallthru
        _
      %p233 = scmp.le.s32.totalorder 1, %s19
      %p234 = scmp.lt.s32.totalorder %s19, 3
      %p235 = pnand %p233, %p234
      %p236 = pneg %p235
      // Predicated region
      $region33: #{tpu_custom_call.1} parent=5 // pred_check
        _
      $region34: #{tpu_custom_call.1} parent=5 // pred_check_branch
        %238 = sbr.rel (%p235) target = $region36
      $region35: #{tpu_custom_call.1} parent=5 // pred_region
        %s239 = ssub.s32 %s19, 1
        %s240 = sand.u32 %s46, 1
        %s241 = scalar_lea.sflag [#allocation3], %s240
        %s242 = sand.u32 %s46, 1
        %s243 = smul.addr %s242, 16
        %s244 = scalar_lea.vmem [#allocation2], %s243
        // Predicated region
        $region37: #{tpu_custom_call.1} parent=35 // pred_check
          %p245 = pneg %p59
        $region38: #{tpu_custom_call.1} parent=35 // pred_check_branch
          %247 = sbr.rel (%p245) target = $region40
        $region39: #{tpu_custom_call.1} parent=35 // pred_region
          %249 = dma.done %s241, 256
        $region40: #{tpu_custom_call.1} parent=35 // pred_fallthru
          _
        %s250 = sand.u32 %s72, 1
        %s251 = scalar_lea.sflag [#allocation6], %s250
        %s252 = sand.u32 %s72, 1
        %s253 = smul.addr %s252, 8
        %s254 = scalar_lea.vmem [#allocation5], %s253
        // Predicated region
        $region41: #{tpu_custom_call.1} parent=35 // pred_check
          %p255 = pneg %p85
        $region42: #{tpu_custom_call.1} parent=35 // pred_check_branch
          %257 = sbr.rel (%p255) target = $region44
        $region43: #{tpu_custom_call.1} parent=35 // pred_region
          %259 = dma.done %s251, 128
        $region44: #{tpu_custom_call.1} parent=35 // pred_fallthru
          _
        %s260 = sand.u32 %s46, 1
        %s261 = scalar_lea.sflag [#allocation3], %s260
        %s262 = sand.u32 %s46, 1
        %s263 = smul.addr %s262, 16
        %s264 = scalar_lea.vmem [#allocation2], %s263
        %p265 = pneg %p59
        %p266 = pneg %p56
        %s267 = sand.u32 %s72, 1
        %s268 = scalar_lea.sflag [#allocation6], %s267
        %s269 = sand.u32 %s72, 1
        %s270 = smul.addr %s269, 8
        %s271 = scalar_lea.vmem [#allocation5], %s270
        %p272 = pneg %p85
        %p273 = pneg %p82
        %p274 = scmp.lt.s32.totalorder %s28, 1
        %s275 = scalar_select %p274, %s28, 1
        %s276 = smul.addr %s275, 8
        %s277 = scalar_lea.vmem %s2, %s276
        %p278 = pneg %p111
        %p279 = pneg %p108
        %p280 = pneg %p132
        %p281 = pneg %p129
        %p282 = pneg %p160
        %p283 = pneg %p157
        %s284 = sand.u32 %s147, 1
        %s285 = scalar_lea.sflag [#allocation4], %s284
        %s286 = sand.u32 %s147, 1
        %s287 = smul.addr %s286, 32
        %s288 = scalar_lea.vmem [#allocation7], %s287
        %s289 = smul.u32 2, %s29
        %p290 = scmp.lt.s32.totalorder %s28, 1
        %s291 = scalar_select %p290, %s28, 1
        %s292 = smul.addr %s291, 8
        %s293 = scalar_lea.vmem %s2, %s292
        %s294 = smul.u32 2, %s29
        %v295 = vld [vmem:[%s254] sm:$0xff]
        %v296 = vld [vmem:[%s244] sm:$0xff]
        %298 = vst [vmem:[#allocation1] ss:$2 sm:$0xff] %v296
        %v299 = vld.sshfl [vmem:[#allocation1 + $0x8] sm:$0xff pattern:$0x75316420]
        %300 = vrot.lane.b32.xlu0 %v299, 17
        %v301 = vpop.permute.xlu0 %300
        %303 = vst [vmem:[#allocation1] ss:$2 sm:$0xff] %v296
        %v304 = vld.sshfl [vmem:[#allocation1] sm:$0xff pattern:$0x75316420]
        %v305 = vld.sshfl [vmem:[#allocation1 + $0x8] sm:$0xff pattern:$0x75316420]
        %306 = vrot.lane.b32.xlu0 %v304, 17
        %v307 = vpop.permute.xlu0 %306
        %308 = vrot.lane.b32.xlu0 %v305, 17
        %v309 = vpop.permute.xlu0 %308
        %vm310 = vcmask 138240
        %v311 = vsel %vm310, %v307, %v309
        %v314 = vsel %vm310, %v301, %v307
        %v315 = vld [vmem:[%s3] sm:$0x3]
        %v317 = vperm.slane %v315, 0
        %v318 = vperm.slane %v315, 1
        %v321 = vmul.f32 %v314, %v317
        %v322 = vmul.f32 %v311, %v318
        %323 = vst [vmem:[#allocation1] ss:$2 sm:$0xff] %v296
        %v324 = vld.sshfl [vmem:[#allocation1 + $0x8] sm:$0xff pattern:$0x75316420]
        %325 = vrot.lane.b32.xlu0 %v324, 16
        %v326 = vpop.permute.xlu0 %325
        %328 = vst [vmem:[#allocation1] ss:$2 sm:$0xff] %v296
        %v329 = vld.sshfl [vmem:[#allocation1] sm:$0xff pattern:$0x75316420]
        %v330 = vld.sshfl [vmem:[#allocation1 + $0x8] sm:$0xff pattern:$0x75316420]
        %331 = vrot.lane.b32.xlu0 %v329, 16
        %v332 = vpop.permute.xlu0 %331
        %333 = vrot.lane.b32.xlu0 %v330, 16
        %v334 = vpop.permute.xlu0 %333
        %vm335 = vcmask 130048
        %v336 = vsel %vm335, %v332, %v334
        %v339 = vsel %vm335, %v326, %v332
        %s340 = scalar_lea.vmem %s3, 2
        %v341 = vld [vmem:[%s340] sm:$0x3]
        %v343 = vperm.slane %v341, 0
        %v344 = vperm.slane %v341, 1
        %v347 = vmul.f32 %v339, %v343
        %v348 = vmul.f32 %v336, %v344
        %349 = vst [vmem:[#allocation1] ss:$2 sm:$0xff] %v296
        %v350 = vld.sshfl [vmem:[#allocation1 + $0x8] sm:$0xff pattern:$0x75316420]
        %351 = vrot.lane.b32.xlu0 %v350, 15
        %v352 = vpop.permute.xlu0 %351
        %354 = vst [vmem:[#allocation1] ss:$2 sm:$0xff] %v296
        %v355 = vld.sshfl [vmem:[#allocation1] sm:$0xff pattern:$0x75316420]
        %v356 = vld.sshfl [vmem:[#allocation1 + $0x8] sm:$0xff pattern:$0x75316420]
        %357 = vrot.lane.b32.xlu0 %v355, 15
        %v358 = vpop.permute.xlu0 %357
        %359 = vrot.lane.b32.xlu0 %v356, 15
        %v360 = vpop.permute.xlu0 %359
        %vm361 = vcmask 121856
        %v362 = vsel %vm361, %v358, %v360
        %v365 = vsel %vm361, %v352, %v358
        %s366 = scalar_lea.vmem %s3, 4
        %v367 = vld [vmem:[%s366] sm:$0x3]
        %v369 = vperm.slane %v367, 0
        %v370 = vperm.slane %v367, 1
        %v373 = vmul.f32 %v365, %v369
        %v374 = vmul.f32 %v362, %v370
        %375 = vst [vmem:[#allocation1] ss:$2 sm:$0xff] %v296
        %v376 = vld.sshfl [vmem:[#allocation1 + $0x8] sm:$0xff pattern:$0x75316420]
        %377 = vrot.lane.b32.xlu0 %v376, 1
        %v378 = vpop.permute.xlu0 %377
        %380 = vst [vmem:[#allocation1] ss:$2 sm:$0xff] %v296
        %v381 = vld.sshfl [vmem:[#allocation1] sm:$0xff pattern:$0x75316420]
        %v382 = vld.sshfl [vmem:[#allocation1 + $0x8] sm:$0xff pattern:$0x75316420]
        %383 = vrot.lane.b32.xlu0 %v381, 1
        %v384 = vpop.permute.xlu0 %383
        %385 = vrot.lane.b32.xlu0 %v382, 1
        %v386 = vpop.permute.xlu0 %385
        %vm387 = vcmask 7168
        %v388 = vsel %vm387, %v384, %v386
        %v391 = vsel %vm387, %v378, %v384
        %s392 = scalar_lea.vmem %s3, 6
        %v393 = vld [vmem:[%s392] sm:$0x3]
        %v395 = vperm.slane %v393, 0
        %v396 = vperm.slane %v393, 1
        %v399 = vmul.f32 %v391, %v395
        %v400 = vmul.f32 %v388, %v396
        %s401 = scalar_lea.vmem %s3, 8
        %v402 = vld [vmem:[%s401] sm:$0x3]
        %v404 = vperm.slane %v402, 0
        %v405 = vperm.slane %v402, 1
        %v406 = vrot.slane %v405, 4
        %vm407 = vcmask 1043456
        %v408 = vsel %vm407, %v404, %v406
        %v410 = vmul.f32 %v296, %v408
        %411 = vst [vmem:[#allocation1] ss:$2 sm:$0xff] %v296
        %v412 = vld.sshfl [vmem:[#allocation1] sm:$0xff pattern:$0x75316420]
        %v413 = vld.sshfl [vmem:[#allocation1 + $0x8] sm:$0xff pattern:$0x75316420]
        %414 = vrot.lane.b32.xlu0 %v412, 127
        %v415 = vpop.permute.xlu0 %414
        %416 = vrot.lane.b32.xlu0 %v413, 127
        %v417 = vpop.permute.xlu0 %416
        %vm418 = vcmask 1039360
        %v419 = vsel %vm418, %v415, %v417
        %422 = vst [vmem:[#allocation1] ss:$2 sm:$0xff] %v296
        %v423 = vld.sshfl [vmem:[#allocation1] sm:$0xff pattern:$0x75316420]
        %424 = vrot.lane.b32.xlu0 %v423, 127
        %v425 = vpop.permute.xlu0 %424
        %v427 = vsel %vm418, %v417, %v425
        %s428 = scalar_lea.vmem %s3, 10
        %v429 = vld [vmem:[%s428] sm:$0x3]
        %v431 = vperm.slane %v429, 0
        %v432 = vperm.slane %v429, 1
        %v435 = vmul.f32 %v419, %v431
        %v436 = vmul.f32 %v427, %v432
        %437 = vst [vmem:[#allocation1] ss:$2 sm:$0xff] %v296
        %v438 = vld.sshfl [vmem:[#allocation1] sm:$0xff pattern:$0x75316420]
        %v439 = vld.sshfl [vmem:[#allocation1 + $0x8] sm:$0xff pattern:$0x75316420]
        %440 = vrot.lane.b32.xlu0 %v438, 113
        %v441 = vpop.permute.xlu0 %440
        %442 = vrot.lane.b32.xlu0 %v439, 113
        %v443 = vpop.permute.xlu0 %442
        %vm444 = vcmask 924672
        %v445 = vsel %vm444, %v441, %v443
        %448 = vst [vmem:[#allocation1] ss:$2 sm:$0xff] %v296
        %v449 = vld.sshfl [vmem:[#allocation1] sm:$0xff pattern:$0x75316420]
        %450 = vrot.lane.b32.xlu0 %v449, 113
        %v451 = vpop.permute.xlu0 %450
        %v453 = vsel %vm444, %v443, %v451
        %s454 = scalar_lea.vmem %s3, 12
        %v455 = vld [vmem:[%s454] sm:$0x3]
        %v457 = vperm.slane %v455, 0
        %v458 = vperm.slane %v455, 1
        %v461 = vmul.f32 %v445, %v457
        %v462 = vmul.f32 %v453, %v458
        %463 = vst [vmem:[#allocation1] ss:$2 sm:$0xff] %v296
        %v464 = vld.sshfl [vmem:[#allocation1] sm:$0xff pattern:$0x75316420]
        %v465 = vld.sshfl [vmem:[#allocation1 + $0x8] sm:$0xff pattern:$0x75316420]
        %466 = vrot.lane.b32.xlu0 %v464, 112
        %v467 = vpop.permute.xlu0 %466
        %468 = vrot.lane.b32.xlu0 %v465, 112
        %v469 = vpop.permute.xlu0 %468
        %vm470 = vcmask 916480
        %v471 = vsel %vm470, %v467, %v469
        %474 = vst [vmem:[#allocation1] ss:$2 sm:$0xff] %v296
        %v475 = vld.sshfl [vmem:[#allocation1] sm:$0xff pattern:$0x75316420]
        %476 = vrot.lane.b32.xlu0 %v475, 112
        %v477 = vpop.permute.xlu0 %476
        %v479 = vsel %vm470, %v469, %v477
        %s480 = scalar_lea.vmem %s3, 14
        %v481 = vld [vmem:[%s480] sm:$0x3]
        %v483 = vperm.slane %v481, 0
        %v484 = vperm.slane %v481, 1
        %v487 = vmul.f32 %v471, %v483
        %v488 = vmul.f32 %v479, %v484
        %489 = vst [vmem:[#allocation1] ss:$2 sm:$0xff] %v296
        %v490 = vld.sshfl [vmem:[#allocation1] sm:$0xff pattern:$0x75316420]
        %v491 = vld.sshfl [vmem:[#allocation1 + $0x8] sm:$0xff pattern:$0x75316420]
        %492 = vrot.lane.b32.xlu0 %v490, 111
        %v493 = vpop.permute.xlu0 %492
        %494 = vrot.lane.b32.xlu0 %v491, 111
        %v495 = vpop.permute.xlu0 %494
        %vm496 = vcmask 908288
        %v497 = vsel %vm496, %v493, %v495
        %500 = vst [vmem:[#allocation1] ss:$2 sm:$0xff] %v296
        %v501 = vld.sshfl [vmem:[#allocation1] sm:$0xff pattern:$0x75316420]
        %502 = vrot.lane.b32.xlu0 %v501, 111
        %v503 = vpop.permute.xlu0 %502
        %v505 = vsel %vm496, %v495, %v503
        %s506 = scalar_lea.vmem %s3, 16
        %v507 = vld [vmem:[%s506] sm:$0x3]
        %v509 = vperm.slane %v507, 0
        %v510 = vperm.slane %v507, 1
        %v513 = vmul.f32 %v497, %v509
        %v514 = vmul.f32 %v505, %v510
        %v517 = vrot.slane %v347, 4
        %v518 = vrot.slane %v348, 4
        %v523 = vrot.slane %v399, 4
        %v524 = vrot.slane %v400, 4
        %528 = vst [vmem:[#allocation1] ss:$2 sm:$0xff] %v410
        %v529 = vld.sshfl [vmem:[#allocation1] sm:$0xff pattern:$0x75316420]
        %v530 = vld.sshfl [vmem:[#allocation1 + $0x8] sm:$0xff pattern:$0x75316420]
        %v535 = vrot.slane %v435, 4
        %v536 = vrot.slane %v436, 4
        %v541 = vrot.slane %v487, 4
        %v542 = vrot.slane %v488, 4
        %v545 = vsel %vm407, %v321, %v517
        %v546 = vsel %vm407, %v322, %v518
        %v547 = vsel %vm407, %v373, %v523
        %v548 = vsel %vm407, %v374, %v524
        %v549 = vsel %vm407, %v529, %v535
        %v550 = vsel %vm407, %v530, %v536
        %v551 = vsel %vm407, %v461, %v541
        %v552 = vsel %vm407, %v462, %v542
        %s553 = scalar_lea.vmem %s244, 8 [#allocation2]
        %v554 = vld [vmem:[%s553] sm:$0xff]
        %556 = vst [vmem:[#allocation1] ss:$2 sm:$0xff] %v554
        %v557 = vld.sshfl [vmem:[#allocation1 + $0x8] sm:$0xff pattern:$0x75316420]
        %558 = vrot.lane.b32.xlu0 %v557, 17
        %v559 = vpop.permute.xlu0 %558
        %561 = vst [vmem:[#allocation1] ss:$2 sm:$0xff] %v554
        %v562 = vld.sshfl [vmem:[#allocation1] sm:$0xff pattern:$0x75316420]
        %v563 = vld.sshfl [vmem:[#allocation1 + $0x8] sm:$0xff pattern:$0x75316420]
        %564 = vrot.lane.b32.xlu0 %v562, 17
        %v565 = vpop.permute.xlu0 %564
        %566 = vrot.lane.b32.xlu0 %v563, 17
        %v567 = vpop.permute.xlu0 %566
        %v568 = vsel %vm310, %v565, %v567
        %v571 = vsel %vm310, %v559, %v565
        %v572 = vmul.f32 %v571, %v317
        %v573 = vmul.f32 %v568, %v318
        %574 = vst [vmem:[#allocation1] ss:$2 sm:$0xff] %v554
        %v575 = vld.sshfl [vmem:[#allocation1 + $0x8] sm:$0xff pattern:$0x75316420]
        %576 = vrot.lane.b32.xlu0 %v575, 16
        %v577 = vpop.permute.xlu0 %576
        %579 = vst [vmem:[#allocation1] ss:$2 sm:$0xff] %v554
        %v580 = vld.sshfl [vmem:[#allocation1] sm:$0xff pattern:$0x75316420]
        %v581 = vld.sshfl [vmem:[#allocation1 + $0x8] sm:$0xff pattern:$0x75316420]
        %582 = vrot.lane.b32.xlu0 %v580, 16
        %v583 = vpop.permute.xlu0 %582
        %584 = vrot.lane.b32.xlu0 %v581, 16
        %v585 = vpop.permute.xlu0 %584
        %v586 = vsel %vm335, %v583, %v585
        %v589 = vsel %vm335, %v577, %v583
        %v590 = vmul.f32 %v589, %v343
        %v591 = vmul.f32 %v586, %v344
        %592 = vst [vmem:[#allocation1] ss:$2 sm:$0xff] %v554
        %v593 = vld.sshfl [vmem:[#allocation1 + $0x8] sm:$0xff pattern:$0x75316420]
        %594 = vrot.lane.b32.xlu0 %v593, 15
        %v595 = vpop.permute.xlu0 %594
        %597 = vst [vmem:[#allocation1] ss:$2 sm:$0xff] %v554
        %v598 = vld.sshfl [vmem:[#allocation1] sm:$0xff pattern:$0x75316420]
        %v599 = vld.sshfl [vmem:[#allocation1 + $0x8] sm:$0xff pattern:$0x75316420]
        %600 = vrot.lane.b32.xlu0 %v598, 15
        %v601 = vpop.permute.xlu0 %600
        %602 = vrot.lane.b32.xlu0 %v599, 15
        %v603 = vpop.permute.xlu0 %602
        %v604 = vsel %vm361, %v601, %v603
        %v607 = vsel %vm361, %v595, %v601
        %v608 = vmul.f32 %v607, %v369
        %v609 = vmul.f32 %v604, %v370
        %610 = vst [vmem:[#allocation1] ss:$2 sm:$0xff] %v554
        %v611 = vld.sshfl [vmem:[#allocation1 + $0x8] sm:$0xff pattern:$0x75316420]
        %612 = vrot.lane.b32.xlu0 %v611, 1
        %v613 = vpop.permute.xlu0 %612
        %615 = vst [vmem:[#allocation1] ss:$2 sm:$0xff] %v554
        %v616 = vld.sshfl [vmem:[#allocation1] sm:$0xff pattern:$0x75316420]
        %v617 = vld.sshfl [vmem:[#allocation1 + $0x8] sm:$0xff pattern:$0x75316420]
        %618 = vrot.lane.b32.xlu0 %v616, 1
        %v619 = vpop.permute.xlu0 %618
        %620 = vrot.lane.b32.xlu0 %v617, 1
        %v621 = vpop.permute.xlu0 %620
        %v622 = vsel %vm387, %v619, %v621
        %v625 = vsel %vm387, %v613, %v619
        %v626 = vmul.f32 %v625, %v395
        %v627 = vmul.f32 %v622, %v396
        %v628 = vmul.f32 %v554, %v408
        %629 = vst [vmem:[#allocation1] ss:$2 sm:$0xff] %v554
        %v630 = vld.sshfl [vmem:[#allocation1] sm:$0xff pattern:$0x75316420]
        %v631 = vld.sshfl [vmem:[#allocation1 + $0x8] sm:$0xff pattern:$0x75316420]
        %632 = vrot.lane.b32.xlu0 %v630, 127
        %v633 = vpop.permute.xlu0 %632
        %634 = vrot.lane.b32.xlu0 %v631, 127
        %v635 = vpop.permute.xlu0 %634
        %v636 = vsel %vm418, %v633, %v635
        %639 = vst [vmem:[#allocation1] ss:$2 sm:$0xff] %v554
        %v640 = vld.sshfl [vmem:[#allocation1] sm:$0xff pattern:$0x75316420]
        %641 = vrot.lane.b32.xlu0 %v640, 127
        %v642 = vpop.permute.xlu0 %641
        %v644 = vsel %vm418, %v635, %v642
        %v645 = vmul.f32 %v636, %v431
        %v646 = vmul.f32 %v644, %v432
        %647 = vst [vmem:[#allocation1] ss:$2 sm:$0xff] %v554
        %v648 = vld.sshfl [vmem:[#allocation1] sm:$0xff pattern:$0x75316420]
        %v649 = vld.sshfl [vmem:[#allocation1 + $0x8] sm:$0xff pattern:$0x75316420]
        %650 = vrot.lane.b32.xlu0 %v648, 113
        %v651 = vpop.permute.xlu0 %650
        %652 = vrot.lane.b32.xlu0 %v649, 113
        %v653 = vpop.permute.xlu0 %652
        %v654 = vsel %vm444, %v651, %v653
        %657 = vst [vmem:[#allocation1] ss:$2 sm:$0xff] %v554
        %v658 = vld.sshfl [vmem:[#allocation1] sm:$0xff pattern:$0x75316420]
        %659 = vrot.lane.b32.xlu0 %v658, 113
        %v660 = vpop.permute.xlu0 %659
        %v662 = vsel %vm444, %v653, %v660
        %v663 = vmul.f32 %v654, %v457
        %v664 = vmul.f32 %v662, %v458
        %665 = vst [vmem:[#allocation1] ss:$2 sm:$0xff] %v554
        %v666 = vld.sshfl [vmem:[#allocation1] sm:$0xff pattern:$0x75316420]
        %v667 = vld.sshfl [vmem:[#allocation1 + $0x8] sm:$0xff pattern:$0x75316420]
        %668 = vrot.lane.b32.xlu0 %v666, 112
        %v669 = vpop.permute.xlu0 %668
        %670 = vrot.lane.b32.xlu0 %v667, 112
        %v671 = vpop.permute.xlu0 %670
        %v672 = vsel %vm470, %v669, %v671
        %675 = vst [vmem:[#allocation1] ss:$2 sm:$0xff] %v554
        %v676 = vld.sshfl [vmem:[#allocation1] sm:$0xff pattern:$0x75316420]
        %677 = vrot.lane.b32.xlu0 %v676, 112
        %v678 = vpop.permute.xlu0 %677
        %v680 = vsel %vm470, %v671, %v678
        %v681 = vmul.f32 %v672, %v483
        %v682 = vmul.f32 %v680, %v484
        %683 = vst [vmem:[#allocation1] ss:$2 sm:$0xff] %v554
        %v684 = vld.sshfl [vmem:[#allocation1] sm:$0xff pattern:$0x75316420]
        %v685 = vld.sshfl [vmem:[#allocation1 + $0x8] sm:$0xff pattern:$0x75316420]
        %686 = vrot.lane.b32.xlu0 %v684, 111
        %v687 = vpop.permute.xlu0 %686
        %688 = vrot.lane.b32.xlu0 %v685, 111
        %v689 = vpop.permute.xlu0 %688
        %v690 = vsel %vm496, %v687, %v689
        %693 = vst [vmem:[#allocation1] ss:$2 sm:$0xff] %v554
        %v694 = vld.sshfl [vmem:[#allocation1] sm:$0xff pattern:$0x75316420]
        %695 = vrot.lane.b32.xlu0 %v694, 111
        %v696 = vpop.permute.xlu0 %695
        %v698 = vsel %vm496, %v689, %v696
        %v699 = vmul.f32 %v690, %v509
        %v700 = vmul.f32 %v698, %v510
        %v703 = vrot.slane %v590, 4
        %v704 = vrot.slane %v591, 4
        %v709 = vrot.slane %v626, 4
        %v710 = vrot.slane %v627, 4
        %714 = vst [vmem:[#allocation1] ss:$2 sm:$0xff] %v628
        %v715 = vld.sshfl [vmem:[#allocation1] sm:$0xff pattern:$0x75316420]
        %v716 = vld.sshfl [vmem:[#allocation1 + $0x8] sm:$0xff pattern:$0x75316420]
        %v721 = vrot.slane %v645, 4
        %v722 = vrot.slane %v646, 4
        %v727 = vrot.slane %v681, 4
        %v728 = vrot.slane %v682, 4
        %v731 = vsel %vm407, %v572, %v703
        %v732 = vsel %vm407, %v573, %v704
        %v733 = vsel %vm407, %v608, %v709
        %v734 = vsel %vm407, %v609, %v710
        %v735 = vsel %vm407, %v715, %v721
        %v736 = vsel %vm407, %v716, %v722
        %v737 = vsel %vm407, %v663, %v727
        %v738 = vsel %vm407, %v664, %v728
        %v739 = vld [vmem:[%s293] sm:$0xff]
        %741 = vset.pattern.permute.xlu0 0
        %742 = vperm.xlu0 %741, %v739
        %v743 = vpop.permute.xlu0 %742
        %vm745 = vcmask 293888
        %v747 = vsel %vm745, %v295, 0
        %v750 = vsel %vm407, %v513, 0
        %v753 = vsel %vm407, %v514, 0
        %v756 = vsel %vm407, %v699, 0
        %v759 = vsel %vm407, %v700, 0
        %761 = vmatpush.msra.mxu0 0.0
        %762 = vmatpush.msra.mxu0 0.0
        %763 = vmatpush.msra.mxu0 0.0
        %764 = vmatpush.msra.mxu0 0.0
        %765 = vmatpush.msra.mxu0 0.0
        %766 = vmatpush.msra.mxu0 0.0
        %767 = vmatpush.msra.mxu0 0.0
        %768 = vmatpush.msra.mxu0 0.0
        %769 = vmatpush.msra.mxu0 0.0
        %770 = vmatpush.msra.mxu0 0.0
        %771 = vmatpush.msra.mxu0 0.0
        %772 = vmatpush.msra.mxu0 %v750
        %773 = vmatpush.msra.mxu0 %v551
        %774 = vmatpush.msra.mxu0 %v549
        %775 = vmatpush.msra.mxu0 %v547
        %776 = vmatpush.msra.mxu0 %v545
        %777 = vmatmul.f32.gmra.mxu0 %v747
        %v778 = vpop.f32.mrf.mxu0
        %v779 = vadd.f32 %v743, %v778
        %780 = vdwg.mxu0
        %781 = vmatpush.msra.mxu0 0.0
        %782 = vmatpush.msra.mxu0 0.0
        %783 = vmatpush.msra.mxu0 0.0
        %784 = vmatpush.msra.mxu0 0.0
        %785 = vmatpush.msra.mxu0 0.0
        %786 = vmatpush.msra.mxu0 0.0
        %787 = vmatpush.msra.mxu0 0.0
        %788 = vmatpush.msra.mxu0 0.0
        %789 = vmatpush.msra.mxu0 0.0
        %790 = vmatpush.msra.mxu0 0.0
        %791 = vmatpush.msra.mxu0 0.0
        %792 = vmatpush.msra.mxu0 %v753
        %793 = vmatpush.msra.mxu0 %v552
        %794 = vmatpush.msra.mxu0 %v550
        %795 = vmatpush.msra.mxu0 %v548
        %796 = vmatpush.msra.mxu0 %v546
        %797 = vmatmul.f32.gmra.mxu0 %v747
        %v798 = vpop.f32.mrf.mxu0
        %v799 = vadd.f32 %v743, %v798
        %800 = vdwg.mxu0
        %801 = vmatpush.msra.mxu0 0.0
        %802 = vmatpush.msra.mxu0 0.0
        %803 = vmatpush.msra.mxu0 0.0
        %804 = vmatpush.msra.mxu0 0.0
        %805 = vmatpush.msra.mxu0 0.0
        %806 = vmatpush.msra.mxu0 0.0
        %807 = vmatpush.msra.mxu0 0.0
        %808 = vmatpush.msra.mxu0 0.0
        %809 = vmatpush.msra.mxu0 0.0
        %810 = vmatpush.msra.mxu0 0.0
        %811 = vmatpush.msra.mxu0 0.0
        %812 = vmatpush.msra.mxu0 %v756
        %813 = vmatpush.msra.mxu0 %v737
        %814 = vmatpush.msra.mxu0 %v735
        %815 = vmatpush.msra.mxu0 %v733
        %816 = vmatpush.msra.mxu0 %v731
        %817 = vmatmul.f32.gmra.mxu0 %v747
        %v818 = vpop.f32.mrf.mxu0
        %v819 = vadd.f32 %v743, %v818
        %820 = vdwg.mxu0
        %821 = vmatpush.msra.mxu0 0.0
        %822 = vmatpush.msra.mxu0 0.0
        %823 = vmatpush.msra.mxu0 0.0
        %824 = vmatpush.msra.mxu0 0.0
        %825 = vmatpush.msra.mxu0 0.0
        %826 = vmatpush.msra.mxu0 0.0
        %827 = vmatpush.msra.mxu0 0.0
        %828 = vmatpush.msra.mxu0 0.0
        %829 = vmatpush.msra.mxu0 0.0
        %830 = vmatpush.msra.mxu0 0.0
        %831 = vmatpush.msra.mxu0 0.0
        %832 = vmatpush.msra.mxu0 %v759
        %833 = vmatpush.msra.mxu0 %v738
        %834 = vmatpush.msra.mxu0 %v736
        %835 = vmatpush.msra.mxu0 %v734
        %836 = vmatpush.msra.mxu0 %v732
        %837 = vmatmul.f32.gmra.mxu0 %v747
        %v838 = vpop.f32.mrf.mxu0
        %v839 = vadd.f32 %v743, %v838
        %840 = vdwg.mxu0
        %v841 = vadd.f32 %v779, %v799
        %842 = vadd.xlane.f32.xlu0 %v841
        %v843 = vpop.xlane.xlu0 %842
        %v844 = vrot.slane %v843, 4
        %v845 = vadd.f32 %v843, %v844
        %v846 = vrot.slane %v845, 2
        %v847 = vadd.f32 %v845, %v846
        %v848 = vrot.slane %v847, 1
        %v849 = vadd.f32 %v847, %v848
        %s850 = vtos %v849
        %v851 = vrcp.pop 2048.0
        %v852 = vmul.f32 2048.0, %v851
        %v853 = vsub.f32 1.0, %v852
        %v854 = vmul.f32 %v851, %v853
        %v855 = vadd.f32 %v851, %v854
        %vm856 = vweird.f32 %v851
        %v857 = vsel %vm856, %v851, %v855
        %s858 = vtos %v857
        %s859 = smul.f32 %s850, %s858
        %v860 = vstv %s859
        %v861 = vsub.f32 %v779, %v860
        %v862 = vsub.f32 %v799, %v860
        %v863 = vmul.f32 %v861, %v861
        %v864 = vmul.f32 %v862, %v862
        %v865 = vadd.f32 %v863, %v864
        %866 = vadd.xlane.f32.xlu0 %v865
        %v867 = vpop.xlane.xlu0 %866
        %v868 = vrot.slane %v867, 4
        %v869 = vadd.f32 %v867, %v868
        %v870 = vrot.slane %v869, 2
        %v871 = vadd.f32 %v869, %v870
        %v872 = vrot.slane %v871, 1
        %v873 = vadd.f32 %v871, %v872
        %s874 = vtos %v873
        %v875 = vrcp.pop 2048.0
        %v876 = vmul.f32 2048.0, %v875
        %v877 = vsub.f32 1.0, %v876
        %v878 = vmul.f32 %v875, %v877
        %v879 = vadd.f32 %v875, %v878
        %vm880 = vweird.f32 %v875
        %v881 = vsel %vm880, %v875, %v879
        %s882 = vtos %v881
        %s883 = smul.f32 %s874, %s882
        %s884 = sadd.f32 %s883, 1e-05
        %v885 = vstv %s884
        %v886 = vrsqrt.pop %v885
        %v887 = vmul.f32 %v886, %v885
        %v888 = vmul.f32 %v887, %v886
        %v889 = vmul.f32 0.5, %v888
        %v890 = vsub.f32 1.5, %v889
        %v891 = vmul.f32 %v886, %v890
        %vm892 = vweird.f32 %v885
        %vm893 = vweird.f32 %v886
        %vm894 = vmor %vm892, %vm893
        %v895 = vsel %vm894, %v886, %v891
        %s896 = vtos %v895
        %v897 = vstv %s896
        %v898 = vmul.f32 %v739, %v897
        %v899 = vmul.f32 %v860, %v898
        %901 = vrot.lane.b32.xlu0 %v899, 1
        %v902 = vpop.permute.xlu0 %901
        %v904 = vsub.f32 %v739, %v902
        %906 = vset.pattern.permute.xlu0 1
        %907 = vperm.xlu0 %906, %v898
        %v908 = vpop.permute.xlu0 %907
        %v910 = vmul.f32 %v779, %v908
        %v911 = vmul.f32 %v799, %v908
        %913 = vset.pattern.permute.xlu0 2
        %914 = vperm.xlu0 %913, %v904
        %v915 = vpop.permute.xlu0 %914
        %v917 = vadd.f32 %v910, %v915
        %v918 = vadd.f32 %v911, %v915
        %v919 = vmul.f32 %v917, 0.2
        %v920 = vmul.f32 %v918, 0.2
        %v921 = vmax.f32 %v917, %v919
        %v922 = vmax.f32 %v918, %v920
        %923 = vst [vmem:[%s288] sm:$0xff] %v921
        %924 = vst [vmem:[%s288 + $0x8] sm:$0xff] %v922
        %v925 = vadd.f32 %v819, %v839
        %926 = vadd.xlane.f32.xlu0 %v925
        %v927 = vpop.xlane.xlu0 %926
        %v928 = vrot.slane %v927, 4
        %v929 = vadd.f32 %v927, %v928
        %v930 = vrot.slane %v929, 2
        %v931 = vadd.f32 %v929, %v930
        %v932 = vrot.slane %v931, 1
        %v933 = vadd.f32 %v931, %v932
        %s934 = vtos %v933
        %v935 = vrcp.pop 2048.0
        %v936 = vmul.f32 2048.0, %v935
        %v937 = vsub.f32 1.0, %v936
        %v938 = vmul.f32 %v935, %v937
        %v939 = vadd.f32 %v935, %v938
        %vm940 = vweird.f32 %v935
        %v941 = vsel %vm940, %v935, %v939
        %s942 = vtos %v941
        %s943 = smul.f32 %s934, %s942
        %v944 = vstv %s943
        %v945 = vsub.f32 %v819, %v944
        %v946 = vsub.f32 %v839, %v944
        %v947 = vmul.f32 %v945, %v945
        %v948 = vmul.f32 %v946, %v946
        %v949 = vadd.f32 %v947, %v948
        %950 = vadd.xlane.f32.xlu0 %v949
        %v951 = vpop.xlane.xlu0 %950
        %v952 = vrot.slane %v951, 4
        %v953 = vadd.f32 %v951, %v952
        %v954 = vrot.slane %v953, 2
        %v955 = vadd.f32 %v953, %v954
        %v956 = vrot.slane %v955, 1
        %v957 = vadd.f32 %v955, %v956
        %s958 = vtos %v957
        %v959 = vrcp.pop 2048.0
        %v960 = vmul.f32 2048.0, %v959
        %v961 = vsub.f32 1.0, %v960
        %v962 = vmul.f32 %v959, %v961
        %v963 = vadd.f32 %v959, %v962
        %vm964 = vweird.f32 %v959
        %v965 = vsel %vm964, %v959, %v963
        %s966 = vtos %v965
        %s967 = smul.f32 %s958, %s966
        %s968 = sadd.f32 %s967, 1e-05
        %v969 = vstv %s968
        %v970 = vrsqrt.pop %v969
        %v971 = vmul.f32 %v970, %v969
        %v972 = vmul.f32 %v971, %v970
        %v973 = vmul.f32 0.5, %v972
        %v974 = vsub.f32 1.5, %v973
        %v975 = vmul.f32 %v970, %v974
        %vm976 = vweird.f32 %v969
        %vm977 = vweird.f32 %v970
        %vm978 = vmor %vm976, %vm977
        %v979 = vsel %vm978, %v970, %v975
        %s980 = vtos %v979
        %v981 = vstv %s980
        %v982 = vmul.f32 %v739, %v981
        %v983 = vmul.f32 %v944, %v982
        %985 = vrot.lane.b32.xlu0 %v983, 1
        %v986 = vpop.permute.xlu0 %985
        %v988 = vsub.f32 %v739, %v986
        %990 = vset.pattern.permute.xlu0 1
        %991 = vperm.xlu0 %990, %v982
        %v992 = vpop.permute.xlu0 %991
        %v994 = vmul.f32 %v819, %v992
        %v995 = vmul.f32 %v839, %v992
        %997 = vset.pattern.permute.xlu0 2
        %998 = vperm.xlu0 %997, %v988
        %v999 = vpop.permute.xlu0 %998
        %v1001 = vadd.f32 %v994, %v999
        %v1002 = vadd.f32 %v995, %v999
        %v1003 = vmul.f32 %v1001, 0.2
        %v1004 = vmul.f32 %v1002, 0.2
        %v1005 = vmax.f32 %v1001, %v1003
        %v1006 = vmax.f32 %v1002, %v1004
        %s1007 = scalar_lea.vmem %s288, 16 [#allocation7]
        %1008 = vst [vmem:[%s1007] sm:$0xff] %v1005
        %1009 = vst [vmem:[%s1007 + $0x8] sm:$0xff] %v1006
        %s1010 = sand.u32 %s147, 1
        %s1011 = scalar_lea.sflag [#allocation4], %s1010
        %s1012 = sand.u32 %s147, 1
        %s1013 = smul.addr %s1012, 32
        %s1014 = scalar_lea.vmem [#allocation7], %s1013
        // Predicated region
        $region45: #{tpu_custom_call.1} parent=35 // pred_check
          %p1015 = pneg %p157
        $region46: #{tpu_custom_call.1} parent=35 // pred_check_branch
          %1017 = sbr.rel (%p1015) target = $region48
        $region47: #{tpu_custom_call.1} parent=35 // pred_region
          %s1018 = smul.u32 2, %s29
          %1020 = vsyncadd %s1011, 0
          %s1021 = smul.addr %s28, 2
          %s1022 = smul.addr %s1018, 4
          %s1023 = sadd.s32 %s1021, %s1022
          %s1024 = smul.addr %s1023, 8
          %s1025 = scalar_lea.hbm %s4, %s1024
          %s1026 = sshll.u32 %s1014, 4
          %s1027 = int_to_ptr.vmem [resolvable:$true] %s1026
          %s1028 = sshll.u32 %s1025, 4
          %s1029 = int_to_ptr.hbm [resolvable:$true] %s1028
          %1034 = dma.vmem_to_hbm [thread:$0]  %s1027, 512, %s1029, %s1011, 256, 512, 16
        $region48: #{tpu_custom_call.1} parent=35 // pred_fallthru
          _
      $region36: #{tpu_custom_call.1} parent=5 // pred_fallthru
        _
      %p1035 = scmp.le.s32.totalorder 2, %s19
      // Predicated region
      $region49: #{tpu_custom_call.1} parent=5 // pred_check
        %p1036 = pneg %p1035
      $region50: #{tpu_custom_call.1} parent=5 // pred_check_branch
        %1038 = sbr.rel (%p1036) target = $region52
      $region51: #{tpu_custom_call.1} parent=5 // pred_region
        %s1039 = ssub.s32 %s19, 2
        // Predicated region
        $region53: #{tpu_custom_call.1} parent=51 // pred_check
          %p1040 = pneg %p163
        $region54: #{tpu_custom_call.1} parent=51 // pred_check_branch
          %1042 = sbr.rel (%p1040) target = $region56
        $region55: #{tpu_custom_call.1} parent=51 // pred_region
          %s1043 = sand.u32 %s148, 1
          %s1044 = scalar_lea.sflag [#allocation4], %s1043
          %s1045 = sand.u32 %s148, 1
          %s1046 = smul.addr %s1045, 32
          %s1047 = scalar_lea.vmem [#allocation7], %s1046
          %1049 = dma.done %s1044, 512
        $region56: #{tpu_custom_call.1} parent=51 // pred_fallthru
          _
      $region52: #{tpu_custom_call.1} parent=5 // pred_fallthru
        _
    $region6: #{tpu_custom_call.1} parent=1 // loop_footer
      %s23 = sadd.s32 1, %s19
    $region7: #{tpu_custom_call.1} parent=1 // loop_footer_branch
      %18 = sbr.rel target = $region3
    $region8: #{tpu_custom_call.1} parent=1 // loop_exit
      _
    %1050 = vsyncpa [#allocation3], 1
    %s1051 = scalar_lea.sflag [#allocation3], 1
    %1052 = vsyncpa %s1051, 1
    %1053 = vsyncpa [#allocation6], 1
    %s1054 = scalar_lea.sflag [#allocation6], 1
    %1055 = vsyncpa %s1054, 1
    %1056 = vsyncpa [#allocation4], 1
    %s1057 = scalar_lea.sflag [#allocation4], 1
    %1058 = vsyncpa %s1057, 1

</llo_original>
